<compile_context>
chip_gen: v5e
topology: v5e:2x2
jax: 0.10.0
libtpu: 0.0.40
codegen_flags: <defaults>
</compile_context>

<pallas_src>
import functools

import jax
import jax.numpy as jnp
from jax import lax
from jax.experimental import pallas as pl
from jax.experimental.pallas import tpu as pltpu


def _round_up(x, m):
    return ((x + m - 1) // m) * m


# ---------------------------------------------------------------------------
# Path 1: HBM row gather via per-row async DMA (table never enters VMEM).
# ---------------------------------------------------------------------------
def _gather_kernel(ids_ref, table_hbm, out_ref, sem, *, ring):
    """Gather one (tile_t, D) output block: tile_t row DMAs, `ring` in flight."""
    tile_t = out_ref.shape[0]
    base = pl.program_id(0) * tile_t

    def start_row(i, slot):
        pltpu.make_async_copy(
            table_hbm.at[ids_ref[base + i]], out_ref.at[i], sem.at[slot]
        ).start()

    def wait_slot(slot):
        # dst/src here only define the transfer shape for the wait; they are
        # neither read nor written by the wait itself.
        pltpu.make_async_copy(table_hbm.at[0], out_ref.at[0], sem.at[slot]).wait()

    # Prime the DMA ring.
    @pl.loop(0, ring)
    def _prime(i):
        start_row(i, i)

    # Steady state: retire the oldest copy on this slot, then reuse the slot.
    if tile_t > ring:
        @pl.loop(ring, tile_t)
        def _steady(i):
            slot = i % ring
            wait_slot(slot)
            start_row(i, slot)

    # Drain the last `ring` outstanding copies so the output block is complete
    # before the pipeline writes it back to HBM.
    @pl.loop(tile_t - ring, tile_t)
    def _drain(i):
        wait_slot(i % ring)


def _embed_gather(flat_ids, table, *, tile_t, ring):
    T = flat_ids.shape[0]
    V, D = table.shape

    tile_t = min(tile_t, _round_up(T, 8))
    num_tiles = pl.cdiv(T, tile_t)
    T_pad = num_tiles * tile_t
    ring = max(1, min(ring, tile_t))

    if T_pad != T:
        flat_ids = jnp.pad(flat_ids, (0, T_pad - T))   # pad with row 0 (valid)

    itemsize = jnp.dtype(table.dtype).itemsize
    cost = pl.CostEstimate(
        flops=0,
        transcendentals=0,
        bytes_accessed=2 * T_pad * D * itemsize + T_pad * 4,
    )

    out = pl.pallas_call(
        functools.partial(_gather_kernel, ring=ring),
        out_shape=jax.ShapeDtypeStruct((T_pad, D), table.dtype),
        grid_spec=pltpu.PrefetchScalarGridSpec(
            num_scalar_prefetch=1,                          # flat ids -> SMEM
            grid=(num_tiles,),
            in_specs=[pl.BlockSpec(memory_space=pl.ANY)],   # table stays in HBM
            out_specs=pl.BlockSpec((tile_t, D), lambda t, ids: (t, 0)),
            scratch_shapes=[pltpu.SemaphoreType.DMA((ring,))],
        ),
        compiler_params=pltpu.CompilerParams(
            dimension_semantics=("parallel",),   # token-tile axis shards on v7x
        ),
        cost_estimate=cost,
    )(flat_ids, table)
    return out[:T]


# ---------------------------------------------------------------------------
# Path 2: resident-table one-hot matmul (tiny vocabularies only).
# ---------------------------------------------------------------------------
def _onehot_kernel(idx_ref, table_ref, out_ref):
    idx = idx_ref[...]                            # (tile_t, 1) int32
    tile_t = idx.shape[0]
    v_pad = table_ref.shape[0]
    # One-hot with the vocab on the lane (last) axis, tokens on sublanes.
    iota = lax.broadcasted_iota(jnp.int32, (tile_t, v_pad), 1)
    onehot = (iota == idx).astype(table_ref.dtype)
    out_ref[...] = jnp.dot(
        onehot, table_ref[...], preferred_element_type=jnp.float32
    ).astype(out_ref.dtype)


def _embed_onehot(flat_ids, table, *, tile_t, mxu_dtype):
    T = flat_ids.shape[0]
    V, D = table.shape
    out_dtype = table.dtype

    tile_t = min(tile_t, _round_up(T, 8))
    num_tiles = pl.cdiv(T, tile_t)
    T_pad = num_tiles * tile_t
    if T_pad != T:
        flat_ids = jnp.pad(flat_ids, (0, T_pad - T))
    idx_col = flat_ids.reshape(T_pad, 1)           # (tile_t, 1) blocks

    # Zero-pad the vocab axis to a multiple of 256 so the MXU K dim is filled;
    # zero rows are exact (never selected once ids are clamped to [0, V-1]).
    V_pad = _round_up(V, 256)
    if mxu_dtype is not None:
        # Opt-in bf16 table: avoids multi-pass f32 MXU and halves VMEM, at the
        # cost of bf16-precision embedding rows (off by default: stays exact).
        table = table.astype(mxu_dtype)
    if V_pad != V:
        table = jnp.pad(table, ((0, V_pad - V), (0, 0)))

    tab_itemsize = jnp.dtype(table.dtype).itemsize
    out_itemsize = jnp.dtype(out_dtype).itemsize
    table_bytes = V_pad * D * tab_itemsize
    # Explicit scoped-VMEM budget: double-buffered table/idx/out blocks plus
    # the (tile_t, V_pad) one-hot temporary plus headroom.
    need = (2 * table_bytes
            + 2 * tile_t * 4
            + 2 * tile_t * D * out_itemsize
            + 2 * tile_t * V_pad * 4)
    vmem_limit = max(32 << 20, min(need + (8 << 20), 56 << 20))

    cost = pl.CostEstimate(
        flops=2 * T_pad * V_pad * D,
        transcendentals=0,
        bytes_accessed=table_bytes + T_pad * 4 + T_pad * D * out_itemsize,
    )

    out = pl.pallas_call(
        _onehot_kernel,
        out_shape=jax.ShapeDtypeStruct((T_pad, D), out_dtype),
        grid_spec=pltpu.PrefetchScalarGridSpec(
            num_scalar_prefetch=0,
            grid=(num_tiles,),
            in_specs=[
                # Per-step (tile_t, 1) block of token ids.
                pl.BlockSpec((tile_t, 1), lambda t: (t, 0)),
                # Grid-invariant: the whole (V_pad, D) table stays VMEM-resident.
                pl.BlockSpec((V_pad, D), lambda t: (0, 0)),
            ],
            out_specs=pl.BlockSpec((tile_t, D), lambda t: (t, 0)),
        ),
        compiler_params=pltpu.CompilerParams(
            dimension_semantics=("parallel",),
            vmem_limit_bytes=vmem_limit,
        ),
        cost_estimate=cost,
    )(idx_col, table)
    return out[:T]


# Tables at or below this size stay VMEM-resident (one-hot matmul path);
# anything larger uses the HBM DMA-gather path (required for 32K+ vocabs,
# and for v7x's 64 MiB VMEM / v5e's 16 MiB scoped default).
_ONEHOT_TABLE_BYTES = 2 << 20


def word_embedding(indices, table, *, method="auto", tile_t=512, ring=16,
                   mxu_dtype=None):
    """indices: (B, S) int; table: (V, D) float -> (B, S, D)  (== table[indices]).

    Out-of-range ids are clamped to [0, V-1] (torch nn.Embedding raises).
    """
    B, S = indices.shape
    V, D = table.shape
    T = B * S

    flat = jnp.clip(indices.reshape(T).astype(jnp.int32), 0, V - 1)

    if method == "auto":
        table_bytes = V * D * jnp.dtype(table.dtype).itemsize
        method = "onehot" if table_bytes <= _ONEHOT_TABLE_BYTES else "gather"

    if method == "onehot":
        out = _embed_onehot(flat, table, tile_t=tile_t, mxu_dtype=mxu_dtype)
    elif method == "gather":
        out = _embed_gather(flat, table, tile_t=tile_t, ring=ring)
    else:
        raise ValueError(f"unknown method: {method!r}")

    return out.reshape(B, S, D)


if __name__ == "__main__":
    key = jax.random.PRNGKey(0)
    k_tab, k_idx, k_tab2, k_idx2 = jax.random.split(key, 4)

    # Small demo shapes matching the module's forward: x is (B, S) token ids.
    B, S = 2, 8
    V, D = 32, 128

    # Deterministic synthetic "pretrained" word vectors (wordvec.vectors analogue).
    table = jax.random.normal(k_tab, (V, D), dtype=jnp.float32)
    indices = jax.random.randint(k_idx, (B, S), 0, V, dtype=jnp.int32)
    ref = table[indices]

    # Path 2 (resident-table one-hot matmul) — auto-selected at this tiny size.
    out = jax.block_until_ready(word_embedding(indices, table))
    assert out.shape == (B, S, D)
    assert jnp.allclose(out, ref, atol=1e-5, rtol=1e-5)

    # Path 1 (HBM DMA gather) — exercised explicitly at the same small shapes.
    out_g = jax.block_until_ready(word_embedding(indices, table, method="gather"))
    assert jnp.allclose(out_g, ref, atol=1e-5, rtol=1e-5)

    # Larger vocabulary: "auto" picks the gather path (table > 2 MiB).
    V2, D2, S2 = 4096, 256, 64
    table2 = jax.random.normal(k_tab2, (V2, D2), dtype=jnp.float32)
    indices2 = jax.random.randint(k_idx2, (B, S2), 0, V2, dtype=jnp.int32)
    out2 = jax.block_until_ready(word_embedding(indices2, table2))
    assert out2.shape == (B, S2, D2)
    assert jnp.allclose(out2, table2[indices2], atol=1e-5, rtol=1e-5)

    print("KERNEL_OK")
</pallas_src>

<mosaic_0001>
module attributes {stable_mosaic.version = 11 : i64} {
  func.func @_onehot_kernel(%arg0: i32, %arg1: memref<16x1xi32, #tpu.memory_space<vmem>>, %arg2: memref<256x128xf32, #tpu.memory_space<vmem>>, %arg3: memref<16x128xf32, #tpu.memory_space<vmem>>) attributes {dimension_semantics = [#tpu.dimension_semantics<parallel>], iteration_bounds = array<i64: 1>, scalar_prefetch = 0 : i64, scratch_operands = 0 : i64, tpu.core_type = #tpu.core_type<tc>, window_params = [{transform_indices = @transform_0, window_bounds = array<i64: 16, 1>}, {pipeline_mode = #tpu.pipeline_mode<synchronous>, transform_indices = @transform_1, window_bounds = array<i64: 256, 128>}, {transform_indices = @transform_2, window_bounds = array<i64: 16, 128>}]} {
    %c0 = arith.constant 0 : index
    %c0_0 = arith.constant 0 : index
    %0 = vector.load %arg1[%c0, %c0_0] : memref<16x1xi32, #tpu.memory_space<vmem>>, vector<16x1xi32>
    %1 = tpu.iota {dimensions = array<i32: 1>} : vector<16x256xi32>
    %2 = vector.broadcast %0 : vector<16x1xi32> to vector<16x256xi32>
    %3 = arith.cmpi eq, %1, %2 : vector<16x256xi32>
    %4 = arith.extui %3 : vector<16x256xi1> to vector<16x256xi32>
    %5 = arith.sitofp %4 : vector<16x256xi32> to vector<16x256xf32>
    %c0_1 = arith.constant 0 : index
    %c0_2 = arith.constant 0 : index
    %6 = vector.load %arg2[%c0_1, %c0_2] : memref<256x128xf32, #tpu.memory_space<vmem>>, vector<256x128xf32>
    %cst = arith.constant dense<0.000000e+00> : vector<16x128xf32>
    %7 = tpu.matmul %5, %6, %cst {dimension_numbers = #tpu.dot_dimension_numbers<[1], [0], [0], [1], [0, 0, 1, 1], [], []>} : vector<16x256xf32>, vector<256x128xf32>, vector<16x128xf32> -> vector<16x128xf32>
    %c0_3 = arith.constant 0 : index
    %c0_4 = arith.constant 0 : index
    %8 = vector.load %arg3[%c0_3, %c0_4] : memref<16x128xf32, #tpu.memory_space<vmem>>, vector<16x128xf32>
    tpu.vector_store %arg3[%c0_3, %c0_4], %7 {strides = array<i32>} : memref<16x128xf32, #tpu.memory_space<vmem>>, vector<16x128xf32>,
    return
  }
  func.func @transform_0(%arg0: i32) -> (i32, i32) {
    %c0_i32 = arith.constant 0 : i32
    %c0_i32_0 = arith.constant 0 : i32
    return %arg0, %c0_i32 : i32, i32
  }
  func.func @transform_1(%arg0: i32) -> (i32, i32) {
    %c0_i32 = arith.constant 0 : i32
    %c0_i32_0 = arith.constant 0 : i32
    %c0_i32_1 = arith.constant 0 : i32
    return %c0_i32, %c0_i32_0 : i32, i32
  }
  func.func @transform_2(%arg0: i32) -> (i32, i32) {
    %c0_i32 = arith.constant 0 : i32
    %c0_i32_0 = arith.constant 0 : i32
    return %arg0, %c0_i32 : i32, i32
  }
}

</mosaic_0001>

<llo_original>
// kernel: tpu_custom_call.1
$region0: #{tpu_custom_call.1}
  #allocation0 [shape = 'u32[]', space=smem, size = 0x4, offset = 0x4, fixed_abs, tag = 'smem constant byte address 0x4 - core index']
  #allocation1 [shape = 'u32[72,128]{1,0:T(1,128)}', space=vmem, size = 0x9000, scoped, tag = 'internal scratch']
  %s0 = inlined_call_operand.vmem [shape: s32[16,1], index: 0, kind: input, shape index: {}]
  %s1 = inlined_call_operand.hbm [shape: f32[256,128], index: 1, kind: input, shape index: {}]
  %s2 = inlined_call_operand.hbm [shape: f32[16,128], index: 2, kind: output, shape index: {}]
  %s3 = sld [smem:[#allocation0]]
  $region22: #{tpu_custom_call.1} parent=0
    _
  %s5 = ssub.s32 1, %s3
  %s6 = scalar_select 0, %s5, %s3
  $region1: #{tpu_custom_call.1} parent=0
    #allocation2 [shape = 'u8[131072]{0}', space=vmem, size = 0x20000, scoped, tag = 'input window, operand 1, single buffered']
    #allocation3 [shape = 's32[1]{0}', space=sflag, size = 0x4, scoped, tag = 'scoped memory for tpu_custom_call.1']
    #allocation4 [shape = 's32[1]{0}', space=sflag, size = 0x4, scoped, tag = 'scoped memory for tpu_custom_call.1']
    #allocation5 [shape = 'u8[8192]{0}', space=vmem, size = 0x2000, scoped, tag = 'output window, operand 0, single buffered']
    %7 = vsyncpa [#allocation3], 0
    %8 = vsyncpa [#allocation4], 0
    // Predicated region
    $region2: #{tpu_custom_call.1} parent=1 // pred_check
      _
    $region3: #{tpu_custom_call.1} parent=1 // pred_check_branch
      %10 = sbr.rel (0) target = $region5
    $region4: #{tpu_custom_call.1} parent=1 // pred_region
      _
    $region5: #{tpu_custom_call.1} parent=1 // pred_fallthru
      _
    // Predicated region
    $region6: #{tpu_custom_call.1} parent=1 // pred_check
      _
    $region7: #{tpu_custom_call.1} parent=1 // pred_check_branch
      %12 = sbr.rel (0) target = $region9
    $region8: #{tpu_custom_call.1} parent=1 // pred_region
      %14 = vsyncadd [#allocation3], 0
      %s15 = sshll.u32 %s1, 4
      %s16 = int_to_ptr.hbm [resolvable:$true] %s15
      %s17 = sshll.u32 [#allocation2], 4
      %s18 = int_to_ptr.vmem [resolvable:$true] %s17
      %23 = dma.hbm_to_vmem [thread:$0]  %s16, 4096, %s18, [#allocation3], 128, 128, 8
    $region9: #{tpu_custom_call.1} parent=1 // pred_fallthru
      _
    // Predicated region
    $region10: #{tpu_custom_call.1} parent=1 // pred_check
      _
    $region11: #{tpu_custom_call.1} parent=1 // pred_check_branch
      %25 = sbr.rel (0) target = $region13
    $region12: #{tpu_custom_call.1} parent=1 // pred_region
      %27 = dma.done [#allocation3], 4096
    $region13: #{tpu_custom_call.1} parent=1 // pred_fallthru
      _
    %v28 = vld [vmem:[%s0] sm:$0xff]
    %v29 = vld [vmem:[%s0 + $0x8] sm:$0xff]
    %v30 = vlaneseq
    %v31 = vand.u32 %v30, 127
    %v32 = vadd.s32 %v31, 128
    %33 = vset.pattern.permute.xlu0 0
    %34 = vperm.xlu0 %33, %v28
    %v35 = vpop.permute.xlu0 %34
    %36 = vset.pattern.permute.xlu0 0
    %37 = vperm.xlu0 %36, %v29
    %v38 = vpop.permute.xlu0 %37
    %vm39 = vcmp.eq.s32.totalorder %v31, %v35
    %vm40 = vcmp.eq.s32.totalorder %v32, %v35
    %vm41 = vcmp.eq.s32.totalorder %v31, %v38
    %vm42 = vcmp.eq.s32.totalorder %v32, %v38
    %v43 = vsel %vm39, 1, 0
    %v44 = vsel %vm40, 1, 0
    %v45 = vsel %vm41, 1, 0
    %v46 = vsel %vm42, 1, 0
    %v47 = vcvt.s32.f32 %v43
    %v48 = vcvt.s32.f32 %v44
    %v49 = vcvt.s32.f32 %v45
    %v50 = vcvt.s32.f32 %v46
    %v51 = vld [vmem:[#allocation2] sm:$0xff]
    %v52 = vld [vmem:[#allocation2 + $0x8] sm:$0xff]
    %v53 = vld [vmem:[#allocation2 + $0x10] sm:$0xff]
    %v54 = vld [vmem:[#allocation2 + $0x18] sm:$0xff]
    %v55 = vld [vmem:[#allocation2 + $0x20] sm:$0xff]
    %v56 = vld [vmem:[#allocation2 + $0x28] sm:$0xff]
    %v57 = vld [vmem:[#allocation2 + $0x30] sm:$0xff]
    %v58 = vld [vmem:[#allocation2 + $0x38] sm:$0xff]
    %v59 = vld [vmem:[#allocation2 + $0x40] sm:$0xff]
    %v60 = vld [vmem:[#allocation2 + $0x48] sm:$0xff]
    %v61 = vld [vmem:[#allocation2 + $0x50] sm:$0xff]
    %v62 = vld [vmem:[#allocation2 + $0x58] sm:$0xff]
    %v63 = vld [vmem:[#allocation2 + $0x60] sm:$0xff]
    %v64 = vld [vmem:[#allocation2 + $0x68] sm:$0xff]
    %v65 = vld [vmem:[#allocation2 + $0x70] sm:$0xff]
    %v66 = vld [vmem:[#allocation2 + $0x78] sm:$0xff]
    %v67 = vld [vmem:[#allocation2 + $0x80] sm:$0xff]
    %v68 = vld [vmem:[#allocation2 + $0x88] sm:$0xff]
    %v69 = vld [vmem:[#allocation2 + $0x90] sm:$0xff]
    %v70 = vld [vmem:[#allocation2 + $0x98] sm:$0xff]
    %v71 = vld [vmem:[#allocation2 + $0xa0] sm:$0xff]
    %v72 = vld [vmem:[#allocation2 + $0xa8] sm:$0xff]
    %v73 = vld [vmem:[#allocation2 + $0xb0] sm:$0xff]
    %v74 = vld [vmem:[#allocation2 + $0xb8] sm:$0xff]
    %v75 = vld [vmem:[#allocation2 + $0xc0] sm:$0xff]
    %v76 = vld [vmem:[#allocation2 + $0xc8] sm:$0xff]
    %v77 = vld [vmem:[#allocation2 + $0xd0] sm:$0xff]
    %v78 = vld [vmem:[#allocation2 + $0xd8] sm:$0xff]
    %v79 = vld [vmem:[#allocation2 + $0xe0] sm:$0xff]
    %v80 = vld [vmem:[#allocation2 + $0xe8] sm:$0xff]
    %v81 = vld [vmem:[#allocation2 + $0xf0] sm:$0xff]
    %v82 = vld [vmem:[#allocation2 + $0xf8] sm:$0xff]
    %83 = vmatpush.msra.mxu0 %v66
    %84 = vmatpush.msra.mxu0 %v65
    %85 = vmatpush.msra.mxu0 %v64
    %86 = vmatpush.msra.mxu0 %v63
    %87 = vmatpush.msra.mxu0 %v62
    %88 = vmatpush.msra.mxu0 %v61
    %89 = vmatpush.msra.mxu0 %v60
    %90 = vmatpush.msra.mxu0 %v59
    %91 = vmatpush.msra.mxu0 %v58
    %92 = vmatpush.msra.mxu0 %v57
    %93 = vmatpush.msra.mxu0 %v56
    %94 = vmatpush.msra.mxu0 %v55
    %95 = vmatpush.msra.mxu0 %v54
    %96 = vmatpush.msra.mxu0 %v53
    %97 = vmatpush.msra.mxu0 %v52
    %98 = vmatpush.msra.mxu0 %v51
    %99 = vmatmul.f32.gmra.mxu0 %v47
    %v100 = vpop.f32.mrf.mxu0
    %v101 = vadd.f32 0.0, %v100
    %102 = vmatmul.f32.gmra.mxu0 %v49
    %v103 = vpop.f32.mrf.mxu0
    %v104 = vadd.f32 0.0, %v103
    %105 = vdwg.mxu0
    %106 = vmatpush.msra.mxu0 %v82
    %107 = vmatpush.msra.mxu0 %v81
    %108 = vmatpush.msra.mxu0 %v80
    %109 = vmatpush.msra.mxu0 %v79
    %110 = vmatpush.msra.mxu0 %v78
    %111 = vmatpush.msra.mxu0 %v77
    %112 = vmatpush.msra.mxu0 %v76
    %113 = vmatpush.msra.mxu0 %v75
    %114 = vmatpush.msra.mxu0 %v74
    %115 = vmatpush.msra.mxu0 %v73
    %116 = vmatpush.msra.mxu0 %v72
    %117 = vmatpush.msra.mxu0 %v71
    %118 = vmatpush.msra.mxu0 %v70
    %119 = vmatpush.msra.mxu0 %v69
    %120 = vmatpush.msra.mxu0 %v68
    %121 = vmatpush.msra.mxu0 %v67
    %122 = vmatmul.f32.gmra.mxu0 %v48
    %v123 = vpop.f32.mrf.mxu0
    %v124 = vadd.f32 %v101, %v123
    %125 = vmatmul.f32.gmra.mxu0 %v50
    %v126 = vpop.f32.mrf.mxu0
    %v127 = vadd.f32 %v104, %v126
    %128 = vdwg.mxu0
    %129 = vst [vmem:[#allocation5] sm:$0xff] %v124
    %130 = vst [vmem:[#allocation5 + $0x8] sm:$0xff] %v127
    // Predicated region
    $region14: #{tpu_custom_call.1} parent=1 // pred_check
      _
    $region15: #{tpu_custom_call.1} parent=1 // pred_check_branch
      %132 = sbr.rel (0) target = $region17
    $region16: #{tpu_custom_call.1} parent=1 // pred_region
      %134 = vsyncadd [#allocation4], 0
      %s135 = sshll.u32 [#allocation5], 4
      %s136 = int_to_ptr.vmem [resolvable:$true] %s135
      %s137 = sshll.u32 %s2, 4
      %s138 = int_to_ptr.hbm [resolvable:$true] %s137
      %143 = dma.vmem_to_hbm [thread:$0]  %s136, 256, %s138, [#allocation4], 128, 128, 8
    $region17: #{tpu_custom_call.1} parent=1 // pred_fallthru
      _
    // Predicated region
    $region18: #{tpu_custom_call.1} parent=1 // pred_check
      _
    $region19: #{tpu_custom_call.1} parent=1 // pred_check_branch
      %145 = sbr.rel (0) target = $region21
    $region20: #{tpu_custom_call.1} parent=1 // pred_region
      %147 = dma.done [#allocation4], 256
    $region21: #{tpu_custom_call.1} parent=1 // pred_fallthru
      _
    %148 = vsyncpa [#allocation3], 1
    %149 = vsyncpa [#allocation4], 1

</llo_original>
